<compile_context>
chip_gen: v6e
topology: v6e:2x2x1
jax: 0.10.0
libtpu: 0.0.40
codegen_flags: <defaults>
</compile_context>

<pallas_src>
import math

import numpy as np
import jax
import jax.numpy as jnp
from jax.experimental import pallas as pl
from jax.experimental.pallas import tpu as pltpu

BN_EPS = 1e-5
P_FEAT = 49          # flattened 7x7 spatial map (C == 1)
HID = 32             # Linear(49, 32)
OUT_LANES = 128      # lane-dense packed output width


# ------------------------------ fused kernel -------------------------------

def _fused_forward_kernel(x_ref, m1a_ref, m1b_ref, m3a_ref, m3b_ref, cb_ref,
                          w1_ref, b1_ref, w2_ref, b2_ref, packed_ref):
    """Whole nolatbuild forward for one (TB, 49) batch tile.

    x_ref      : (TB, 49)  f32   input tile (spatial flattened onto lanes)
    m1a/m1b    : (49, 49)  bf16  block-1/2 conv matrices (BN scale folded in)
    m3a/m3b    : (49, 49)  bf16  block-3 conv matrices   (BN scale folded in)
    cb_ref     : (4, 49)   f32   folded conv biases, pre-broadcast over lanes
    w1_ref     : (49, 32)  bf16  Linear(49,32)^T with x4-head BN scale folded
    b1_ref     : (1, 32)   f32
    w2_ref     : (32, n)   bf16  Linear(32,n)^T
    b2_ref     : (1, n)    f32
    packed_ref : (TB, 128) f32   lanes [0:32) = hidden h, [32:32+n) = logits
    """
    x = x_ref[...].astype(jnp.float32)                       # (TB, 49)

    def conv_relu(inp, m_ref, bias):
        # Conv2d(1,1,3,stride=1,padding=1) -> ReLU -> BN(eval), BN folded:
        z = jnp.dot(inp.astype(jnp.bfloat16), m_ref[...],
                    preferred_element_type=jnp.float32) + bias
        return jnp.maximum(z, 0.0)

    def res_block(inp, ma_ref, ba, mb_ref, bb):
        return conv_relu(conv_relu(inp, ma_ref, ba), mb_ref, bb)

    b1a = cb_ref[0:1, :]
    b1b = cb_ref[1:2, :]
    b3a = cb_ref[2:3, :]
    b3b = cb_ref[3:4, :]

    # self.x2 = self.x1 -> blocks 1 and 2 share weights; every residual adds
    # the ORIGINAL input x (matches the PyTorch forward).
    x1 = res_block(x,  m1a_ref, b1a, m1b_ref, b1b) + x       # x1 = self.x1(x)  + x
    x2 = res_block(x1, m1a_ref, b1a, m1b_ref, b1b) + x       # x2 = self.x2(x1) + x
    x3 = res_block(x2, m3a_ref, b3a, m3b_ref, b3b) + x       # x3 = self.x3(x2) + x

    # x4 head: ReLU -> BN(eval, scale folded into w1) -> MaxPool2d((1,1)) == id
    x4 = jnp.maximum(x3, 0.0)

    # MLP (flatten is a no-op: activations are already (TB, 49) row-major).
    h = jnp.maximum(
        jnp.dot(x4.astype(jnp.bfloat16), w1_ref[...],
                preferred_element_type=jnp.float32) + b1_ref[...], 0.0)
    logits = jnp.dot(h.astype(jnp.bfloat16), w2_ref[...],
                     preferred_element_type=jnp.float32) + b2_ref[...]

    # Lane-dense packed store: [ h | logits | zero pad ] -> 128 lanes.
    pad = jnp.zeros((h.shape[0], OUT_LANES - HID - logits.shape[1]),
                    jnp.float32)
    packed_ref[...] = jnp.concatenate([h, logits, pad],
                                      axis=-1).astype(packed_ref.dtype)


# --------------------------------- wrapper ----------------------------------

def nolatbuild_forward(x, fp):
    """Returns (logits, hidden) like the PyTorch module's (out, x2)."""
    B, C, H, W = x.shape
    # Static check: the flatten feeding nn.Linear(49, 32) must be exactly 49.
    assert C == 1 and C * (H // C) * (W // C) == P_FEAT, (
        "nolatbuild requires C == 1, H == W == 7 so that flatten == 49")
    x2d = x.reshape(B, C * H * W)            # matches torch.flatten (C == 1)

    n_classes = fp["w2t"].shape[1]

    # Batch tiling: TB rows per grid step (sublane-aligned), pad B up to TB*G.
    TB = 256
    if B < TB:
        TB = max(8, ((B + 7) // 8) * 8)
    B_pad = ((B + TB - 1) // TB) * TB
    if B_pad != B:
        x2d = jnp.pad(x2d, ((0, B_pad - B), (0, 0)))

    packed = pl.pallas_call(
        _fused_forward_kernel,
        out_shape=jax.ShapeDtypeStruct((B_pad, OUT_LANES), jnp.float32),
        grid_spec=pltpu.PrefetchScalarGridSpec(
            num_scalar_prefetch=0,
            grid=(B_pad // TB,),
            in_specs=[
                pl.BlockSpec((TB, P_FEAT), lambda i: (i, 0)),          # x tile
                pl.BlockSpec((P_FEAT, P_FEAT), lambda i: (0, 0)),      # M1a
                pl.BlockSpec((P_FEAT, P_FEAT), lambda i: (0, 0)),      # M1b
                pl.BlockSpec((P_FEAT, P_FEAT), lambda i: (0, 0)),      # M3a
                pl.BlockSpec((P_FEAT, P_FEAT), lambda i: (0, 0)),      # M3b
                pl.BlockSpec((4, P_FEAT), lambda i: (0, 0)),           # conv biases
                pl.BlockSpec((P_FEAT, HID), lambda i: (0, 0)),         # w1t
                pl.BlockSpec((1, HID), lambda i: (0, 0)),              # b1
                pl.BlockSpec((HID, n_classes), lambda i: (0, 0)),      # w2t
                pl.BlockSpec((1, n_classes), lambda i: (0, 0)),        # b2
            ],
            out_specs=pl.BlockSpec((TB, OUT_LANES), lambda i: (i, 0)),
        ),
        compiler_params=pltpu.CompilerParams(
            dimension_semantics=("parallel",)),
    )(x2d, fp["M1a"], fp["M1b"], fp["M3a"], fp["M3b"], fp["cb"],
      fp["w1t"], fp["b1"], fp["w2t"], fp["b2"])

    hidden = packed[:B, :HID]
    logits = packed[:B, HID:HID + n_classes]
    return logits, hidden


# --------------------------- parameters & folding ----------------------------

def _conv_shift_masks(H, W):
    """masks[k][p, q] == 1 iff tap k of a padding-1 3x3 conv reading input
    position p = (r, c) contributes to output position q = (i, j)."""
    P = H * W
    m = np.zeros((9, P, P), np.float32)
    for kh in range(3):
        for kw in range(3):
            k = kh * 3 + kw
            for i in range(H):
                for j in range(W):
                    r, c = i + kh - 1, j + kw - 1
                    if 0 <= r < H and 0 <= c < W:
                        m[k, r * W + c, i * W + j] = 1.0
    return jnp.asarray(m)


def _uniform(key, shape, bound):
    return jax.random.uniform(key, shape, jnp.float32, -bound, bound)


def init_params(key, C, H, W, n_classes):
    """Raw parameters mirroring the PyTorch module's default init."""
    assert C == 1 and C * H * W == P_FEAT
    keys = jax.random.split(key, 12)
    bc = 1.0 / math.sqrt(C * 9)               # PyTorch Conv2d default bound

    def conv_w(kw_, kb_):
        w = _uniform(kw_, (C, C, 3, 3), bc).reshape(-1)
        b = _uniform(kb_, (C,), bc)
        return w, b

    w1a, b1a = conv_w(keys[0], keys[1])
    w1b, b1b = conv_w(keys[2], keys[3])
    # self.x2 = self.x1 -> weights SHARED; no extra parameters for block 2.
    w3a, b3a = conv_w(keys[4], keys[5])
    w3b, b3b = conv_w(keys[6], keys[7])

    b1l = 1.0 / math.sqrt(float(P_FEAT))
    b2l = 1.0 / math.sqrt(float(HID))
    return {
        "cw": jnp.concatenate([w1a, w1b, w3a, w3b]),            # (36,)
        "cb": jnp.stack([b1a[0], b1b[0], b3a[0], b3b[0]]),      # (4,)
        "w1t": _uniform(keys[8], (P_FEAT, HID), b1l),           # pre-transposed
        "bias1": _uniform(keys[9], (1, HID), b1l),
        "w2t": _uniform(keys[10], (HID, n_classes), b2l),       # pre-transposed
        "bias2": _uniform(keys[11], (1, n_classes), b2l),
    }


def fold_params(raw, H, W):
    """Build kernel-ready inputs: dense conv matrices with eval-mode BN folded
    in, bf16 MXU operands, lane-broadcast biases."""
    P = H * W
    masks = _conv_shift_masks(H, W)                              # (9, P, P)
    bn_scale = 1.0 / math.sqrt(1.0 + BN_EPS)                     # BN eval defaults

    def conv_mat(idx):
        # Dense (P,P) equivalent of Conv2d(1,1,3,3,padding=1), BN scale folded:
        M = jnp.einsum("k,kpq->pq", raw["cw"][idx * 9:(idx + 1) * 9], masks)
        return (M * bn_scale).astype(jnp.bfloat16)

    cb_folded = (raw["cb"] * bn_scale)[:, None] * jnp.ones((1, P), jnp.float32)
    return {
        "M1a": conv_mat(0), "M1b": conv_mat(1),
        "M3a": conv_mat(2), "M3b": conv_mat(3),
        "cb": cb_folded,                                         # (4, P) f32
        # x4-head BN scale folded into Linear(49,32) weight columns:
        "w1t": (raw["w1t"] * bn_scale).astype(jnp.bfloat16),
        "b1": raw["bias1"],
        "w2t": raw["w2t"].astype(jnp.bfloat16),
        "b2": raw["bias2"],
    }


# ----------------------------------- main ------------------------------------

if __name__ == "__main__":
    # in_channels=1 so ResCon2D's output flattens to exactly 49 features, as
    # nn.Linear(49, 32) requires: MaxPool2d((1,1), stride=1) keeps the 7x7 map.
    C, n_classes = 1, 2
    B, H, W = 2, 7, 7

    key = jax.random.PRNGKey(0)
    kx, kp = jax.random.split(key)
    raw_params = init_params(kp, C, H, W, n_classes)
    folded = fold_params(raw_params, H, W)
    x = jax.random.normal(kx, (B, C, H, W), jnp.float32)

    logits, hidden = jax.jit(nolatbuild_forward)(x, folded)
    logits, hidden = jax.block_until_ready((logits, hidden))

    assert logits.shape == (B, n_classes), logits.shape
    assert hidden.shape == (B, HID), hidden.shape
    assert bool(jnp.all(jnp.isfinite(logits))) and bool(jnp.all(jnp.isfinite(hidden)))
    print("KERNEL_OK")
</pallas_src>

<mosaic_0001>
module attributes {stable_mosaic.version = 11 : i64} {
  func.func @_fused_forward_kernel(%arg0: i32, %arg1: memref<8x49xf32, #tpu.memory_space<vmem>>, %arg2: memref<49x49xbf16, #tpu.memory_space<vmem>>, %arg3: memref<49x49xbf16, #tpu.memory_space<vmem>>, %arg4: memref<49x49xbf16, #tpu.memory_space<vmem>>, %arg5: memref<49x49xbf16, #tpu.memory_space<vmem>>, %arg6: memref<4x49xf32, #tpu.memory_space<vmem>>, %arg7: memref<49x32xbf16, #tpu.memory_space<vmem>>, %arg8: memref<1x32xf32, #tpu.memory_space<vmem>>, %arg9: memref<32x2xbf16, #tpu.memory_space<vmem>>, %arg10: memref<1x2xf32, #tpu.memory_space<vmem>>, %arg11: memref<8x128xf32, #tpu.memory_space<vmem>>) attributes {dimension_semantics = [#tpu.dimension_semantics<parallel>], iteration_bounds = array<i64: 1>, scalar_prefetch = 0 : i64, scratch_operands = 0 : i64, tpu.core_type = #tpu.core_type<tc>, window_params = [{transform_indices = @transform_0, window_bounds = array<i64: 8, 49>}, {pipeline_mode = #tpu.pipeline_mode<synchronous>, transform_indices = @transform_1, window_bounds = array<i64: 49, 49>}, {pipeline_mode = #tpu.pipeline_mode<synchronous>, transform_indices = @transform_2, window_bounds = array<i64: 49, 49>}, {pipeline_mode = #tpu.pipeline_mode<synchronous>, transform_indices = @transform_3, window_bounds = array<i64: 49, 49>}, {pipeline_mode = #tpu.pipeline_mode<synchronous>, transform_indices = @transform_4, window_bounds = array<i64: 49, 49>}, {pipeline_mode = #tpu.pipeline_mode<synchronous>, transform_indices = @transform_5, window_bounds = array<i64: 4, 49>}, {pipeline_mode = #tpu.pipeline_mode<synchronous>, transform_indices = @transform_6, window_bounds = array<i64: 49, 32>}, {pipeline_mode = #tpu.pipeline_mode<synchronous>, transform_indices = @transform_7, window_bounds = array<i64: 1, 32>}, {pipeline_mode = #tpu.pipeline_mode<synchronous>, transform_indices = @transform_8, window_bounds = array<i64: 32, 2>}, {pipeline_mode = #tpu.pipeline_mode<synchronous>, transform_indices = @transform_9, window_bounds = array<i64: 1, 2>}, {transform_indices = @transform_10, window_bounds = array<i64: 8, 128>}]} {
    %c0 = arith.constant 0 : index
    %c0_0 = arith.constant 0 : index
    %0 = vector.load %arg1[%c0, %c0_0] : memref<8x49xf32, #tpu.memory_space<vmem>>, vector<8x49xf32>
    %c0_1 = arith.constant 0 : index
    %c0_2 = arith.constant 0 : index
    %1 = vector.load %arg6[%c0_1, %c0_2] : memref<4x49xf32, #tpu.memory_space<vmem>>, vector<1x49xf32>
    %c1 = arith.constant 1 : index
    %c0_3 = arith.constant 0 : index
    %2 = vector.load %arg6[%c1, %c0_3] : memref<4x49xf32, #tpu.memory_space<vmem>>, vector<1x49xf32>
    %c2 = arith.constant 2 : index
    %c0_4 = arith.constant 0 : index
    %3 = vector.load %arg6[%c2, %c0_4] : memref<4x49xf32, #tpu.memory_space<vmem>>, vector<1x49xf32>
    %c3 = arith.constant 3 : index
    %c0_5 = arith.constant 0 : index
    %4 = vector.load %arg6[%c3, %c0_5] : memref<4x49xf32, #tpu.memory_space<vmem>>, vector<1x49xf32>
    %5 = arith.truncf %0 : vector<8x49xf32> to vector<8x49xbf16>
    %c0_6 = arith.constant 0 : index
    %c0_7 = arith.constant 0 : index
    %6 = vector.load %arg2[%c0_6, %c0_7] : memref<49x49xbf16, #tpu.memory_space<vmem>>, vector<49x49xbf16>
    %cst = arith.constant dense<0.000000e+00> : vector<8x49xf32>
    %7 = tpu.matmul %5, %6, %cst {dimension_numbers = #tpu.dot_dimension_numbers<[1], [0], [0], [1], [0, 0, 1, 1], [], []>} : vector<8x49xbf16>, vector<49x49xbf16>, vector<8x49xf32> -> vector<8x49xf32>
    %8 = vector.broadcast %1 : vector<1x49xf32> to vector<8x49xf32>
    %9 = arith.addf %7, %8 : vector<8x49xf32>
    %cst_8 = arith.constant 0.000000e+00 : f32
    %10 = vector.broadcast %cst_8 : f32 to vector<8x49xf32>
    %11 = arith.maximumf %9, %10 : vector<8x49xf32>
    %12 = arith.truncf %11 : vector<8x49xf32> to vector<8x49xbf16>
    %c0_9 = arith.constant 0 : index
    %c0_10 = arith.constant 0 : index
    %13 = vector.load %arg3[%c0_9, %c0_10] : memref<49x49xbf16, #tpu.memory_space<vmem>>, vector<49x49xbf16>
    %cst_11 = arith.constant dense<0.000000e+00> : vector<8x49xf32>
    %14 = tpu.matmul %12, %13, %cst_11 {dimension_numbers = #tpu.dot_dimension_numbers<[1], [0], [0], [1], [0, 0, 1, 1], [], []>} : vector<8x49xbf16>, vector<49x49xbf16>, vector<8x49xf32> -> vector<8x49xf32>
    %15 = vector.broadcast %2 : vector<1x49xf32> to vector<8x49xf32>
    %16 = arith.addf %14, %15 : vector<8x49xf32>
    %cst_12 = arith.constant 0.000000e+00 : f32
    %17 = vector.broadcast %cst_12 : f32 to vector<8x49xf32>
    %18 = arith.maximumf %16, %17 : vector<8x49xf32>
    %19 = arith.addf %18, %0 : vector<8x49xf32>
    %20 = arith.truncf %19 : vector<8x49xf32> to vector<8x49xbf16>
    %c0_13 = arith.constant 0 : index
    %c0_14 = arith.constant 0 : index
    %21 = vector.load %arg2[%c0_13, %c0_14] : memref<49x49xbf16, #tpu.memory_space<vmem>>, vector<49x49xbf16>
    %cst_15 = arith.constant dense<0.000000e+00> : vector<8x49xf32>
    %22 = tpu.matmul %20, %21, %cst_15 {dimension_numbers = #tpu.dot_dimension_numbers<[1], [0], [0], [1], [0, 0, 1, 1], [], []>} : vector<8x49xbf16>, vector<49x49xbf16>, vector<8x49xf32> -> vector<8x49xf32>
    %23 = vector.broadcast %1 : vector<1x49xf32> to vector<8x49xf32>
    %24 = arith.addf %22, %23 : vector<8x49xf32>
    %cst_16 = arith.constant 0.000000e+00 : f32
    %25 = vector.broadcast %cst_16 : f32 to vector<8x49xf32>
    %26 = arith.maximumf %24, %25 : vector<8x49xf32>
    %27 = arith.truncf %26 : vector<8x49xf32> to vector<8x49xbf16>
    %c0_17 = arith.constant 0 : index
    %c0_18 = arith.constant 0 : index
    %28 = vector.load %arg3[%c0_17, %c0_18] : memref<49x49xbf16, #tpu.memory_space<vmem>>, vector<49x49xbf16>
    %cst_19 = arith.constant dense<0.000000e+00> : vector<8x49xf32>
    %29 = tpu.matmul %27, %28, %cst_19 {dimension_numbers = #tpu.dot_dimension_numbers<[1], [0], [0], [1], [0, 0, 1, 1], [], []>} : vector<8x49xbf16>, vector<49x49xbf16>, vector<8x49xf32> -> vector<8x49xf32>
    %30 = vector.broadcast %2 : vector<1x49xf32> to vector<8x49xf32>
    %31 = arith.addf %29, %30 : vector<8x49xf32>
    %cst_20 = arith.constant 0.000000e+00 : f32
    %32 = vector.broadcast %cst_20 : f32 to vector<8x49xf32>
    %33 = arith.maximumf %31, %32 : vector<8x49xf32>
    %34 = arith.addf %33, %0 : vector<8x49xf32>
    %35 = arith.truncf %34 : vector<8x49xf32> to vector<8x49xbf16>
    %c0_21 = arith.constant 0 : index
    %c0_22 = arith.constant 0 : index
    %36 = vector.load %arg4[%c0_21, %c0_22] : memref<49x49xbf16, #tpu.memory_space<vmem>>, vector<49x49xbf16>
    %cst_23 = arith.constant dense<0.000000e+00> : vector<8x49xf32>
    %37 = tpu.matmul %35, %36, %cst_23 {dimension_numbers = #tpu.dot_dimension_numbers<[1], [0], [0], [1], [0, 0, 1, 1], [], []>} : vector<8x49xbf16>, vector<49x49xbf16>, vector<8x49xf32> -> vector<8x49xf32>
    %38 = vector.broadcast %3 : vector<1x49xf32> to vector<8x49xf32>
    %39 = arith.addf %37, %38 : vector<8x49xf32>
    %cst_24 = arith.constant 0.000000e+00 : f32
    %40 = vector.broadcast %cst_24 : f32 to vector<8x49xf32>
    %41 = arith.maximumf %39, %40 : vector<8x49xf32>
    %42 = arith.truncf %41 : vector<8x49xf32> to vector<8x49xbf16>
    %c0_25 = arith.constant 0 : index
    %c0_26 = arith.constant 0 : index
    %43 = vector.load %arg5[%c0_25, %c0_26] : memref<49x49xbf16, #tpu.memory_space<vmem>>, vector<49x49xbf16>
    %cst_27 = arith.constant dense<0.000000e+00> : vector<8x49xf32>
    %44 = tpu.matmul %42, %43, %cst_27 {dimension_numbers = #tpu.dot_dimension_numbers<[1], [0], [0], [1], [0, 0, 1, 1], [], []>} : vector<8x49xbf16>, vector<49x49xbf16>, vector<8x49xf32> -> vector<8x49xf32>
    %45 = vector.broadcast %4 : vector<1x49xf32> to vector<8x49xf32>
    %46 = arith.addf %44, %45 : vector<8x49xf32>
    %cst_28 = arith.constant 0.000000e+00 : f32
    %47 = vector.broadcast %cst_28 : f32 to vector<8x49xf32>
    %48 = arith.maximumf %46, %47 : vector<8x49xf32>
    %49 = arith.addf %48, %0 : vector<8x49xf32>
    %cst_29 = arith.constant 0.000000e+00 : f32
    %50 = vector.broadcast %cst_29 : f32 to vector<8x49xf32>
    %51 = arith.maximumf %49, %50 : vector<8x49xf32>
    %52 = arith.truncf %51 : vector<8x49xf32> to vector<8x49xbf16>
    %c0_30 = arith.constant 0 : index
    %c0_31 = arith.constant 0 : index
    %53 = vector.load %arg7[%c0_30, %c0_31] : memref<49x32xbf16, #tpu.memory_space<vmem>>, vector<49x32xbf16>
    %cst_32 = arith.constant dense<0.000000e+00> : vector<8x32xf32>
    %54 = tpu.matmul %52, %53, %cst_32 {dimension_numbers = #tpu.dot_dimension_numbers<[1], [0], [0], [1], [0, 0, 1, 1], [], []>} : vector<8x49xbf16>, vector<49x32xbf16>, vector<8x32xf32> -> vector<8x32xf32>
    %c0_33 = arith.constant 0 : index
    %c0_34 = arith.constant 0 : index
    %55 = vector.load %arg8[%c0_33, %c0_34] : memref<1x32xf32, #tpu.memory_space<vmem>>, vector<1x32xf32>
    %56 = vector.broadcast %55 : vector<1x32xf32> to vector<8x32xf32>
    %57 = arith.addf %54, %56 : vector<8x32xf32>
    %cst_35 = arith.constant 0.000000e+00 : f32
    %58 = vector.broadcast %cst_35 : f32 to vector<8x32xf32>
    %59 = arith.maximumf %57, %58 : vector<8x32xf32>
    %60 = arith.truncf %59 : vector<8x32xf32> to vector<8x32xbf16>
    %c0_36 = arith.constant 0 : index
    %c0_37 = arith.constant 0 : index
    %61 = vector.load %arg9[%c0_36, %c0_37] : memref<32x2xbf16, #tpu.memory_space<vmem>>, vector<32x2xbf16>
    %cst_38 = arith.constant dense<0.000000e+00> : vector<8x2xf32>
    %62 = tpu.matmul %60, %61, %cst_38 {dimension_numbers = #tpu.dot_dimension_numbers<[1], [0], [0], [1], [0, 0, 1, 1], [], []>} : vector<8x32xbf16>, vector<32x2xbf16>, vector<8x2xf32> -> vector<8x2xf32>
    %c0_39 = arith.constant 0 : index
    %c0_40 = arith.constant 0 : index
    %63 = vector.load %arg10[%c0_39, %c0_40] : memref<1x2xf32, #tpu.memory_space<vmem>>, vector<1x2xf32>
    %64 = vector.broadcast %63 : vector<1x2xf32> to vector<8x2xf32>
    %65 = arith.addf %62, %64 : vector<8x2xf32>
    %cst_41 = arith.constant 0.000000e+00 : f32
    %66 = vector.broadcast %cst_41 : f32 to vector<8x94xf32>
    %67 = tpu.concatenate %59, %65, %66 in 1 : vector<8x32xf32>, vector<8x2xf32>, vector<8x94xf32> -> vector<8x128xf32>
    %c0_42 = arith.constant 0 : index
    %c0_43 = arith.constant 0 : index
    %68 = vector.load %arg11[%c0_42, %c0_43] : memref<8x128xf32, #tpu.memory_space<vmem>>, vector<8x128xf32>
    tpu.vector_store %arg11[%c0_42, %c0_43], %67 {strides = array<i32>} : memref<8x128xf32, #tpu.memory_space<vmem>>, vector<8x128xf32>,
    return
  }
  func.func @transform_0(%arg0: i32) -> (i32, i32) {
    %c0_i32 = arith.constant 0 : i32
    %c0_i32_0 = arith.constant 0 : i32
    return %arg0, %c0_i32 : i32, i32
  }
  func.func @transform_1(%arg0: i32) -> (i32, i32) {
    %c0_i32 = arith.constant 0 : i32
    %c0_i32_0 = arith.constant 0 : i32
    %c0_i32_1 = arith.constant 0 : i32
    return %c0_i32, %c0_i32_0 : i32, i32
  }
  func.func @transform_2(%arg0: i32) -> (i32, i32) {
    %c0_i32 = arith.constant 0 : i32
    %c0_i32_0 = arith.constant 0 : i32
    %c0_i32_1 = arith.constant 0 : i32
    return %c0_i32, %c0_i32_0 : i32, i32
  }
  func.func @transform_3(%arg0: i32) -> (i32, i32) {
    %c0_i32 = arith.constant 0 : i32
    %c0_i32_0 = arith.constant 0 : i32
    %c0_i32_1 = arith.constant 0 : i32
    return %c0_i32, %c0_i32_0 : i32, i32
  }
  func.func @transform_4(%arg0: i32) -> (i32, i32) {
    %c0_i32 = arith.constant 0 : i32
    %c0_i32_0 = arith.constant 0 : i32
    %c0_i32_1 = arith.constant 0 : i32
    return %c0_i32, %c0_i32_0 : i32, i32
  }
  func.func @transform_5(%arg0: i32) -> (i32, i32) {
    %c0_i32 = arith.constant 0 : i32
    %c0_i32_0 = arith.constant 0 : i32
    %c0_i32_1 = arith.constant 0 : i32
    return %c0_i32, %c0_i32_0 : i32, i32
  }
  func.func @transform_6(%arg0: i32) -> (i32, i32) {
    %c0_i32 = arith.constant 0 : i32
    %c0_i32_0 = arith.constant 0 : i32
    %c0_i32_1 = arith.constant 0 : i32
    return %c0_i32, %c0_i32_0 : i32, i32
  }
  func.func @transform_7(%arg0: i32) -> (i32, i32) {
    %c0_i32 = arith.constant 0 : i32
    %c0_i32_0 = arith.constant 0 : i32
    %c0_i32_1 = arith.constant 0 : i32
    return %c0_i32, %c0_i32_0 : i32, i32
  }
  func.func @transform_8(%arg0: i32) -> (i32, i32) {
    %c0_i32 = arith.constant 0 : i32
    %c0_i32_0 = arith.constant 0 : i32
    %c0_i32_1 = arith.constant 0 : i32
    return %c0_i32, %c0_i32_0 : i32, i32
  }
  func.func @transform_9(%arg0: i32) -> (i32, i32) {
    %c0_i32 = arith.constant 0 : i32
    %c0_i32_0 = arith.constant 0 : i32
    %c0_i32_1 = arith.constant 0 : i32
    return %c0_i32, %c0_i32_0 : i32, i32
  }
  func.func @transform_10(%arg0: i32) -> (i32, i32) {
    %c0_i32 = arith.constant 0 : i32
    %c0_i32_0 = arith.constant 0 : i32
    return %arg0, %c0_i32 : i32, i32
  }
}

</mosaic_0001>

<llo_original>
// kernel: nolatbuild_forward.1
$region0: #{nolatbuild_forward.1}
  #allocation0 [shape = 'u32[]', space=smem, size = 0x4, offset = 0x4, fixed_abs, tag = 'smem constant byte address 0x4 - core index']
  #allocation1 [shape = 'u32[144,128]{1,0:T(1,128)}', space=vmem, size = 0x12000, scoped, tag = 'internal scratch']
  %s0 = inlined_call_operand.vmem [shape: f32[8,49], index: 0, kind: input, shape index: {}]
  %s1 = inlined_call_operand.vmem [shape: bf16[49,49], index: 1, kind: input, shape index: {}]
  %s2 = inlined_call_operand.vmem [shape: bf16[49,49], index: 2, kind: input, shape index: {}]
  %s3 = inlined_call_operand.vmem [shape: bf16[49,49], index: 3, kind: input, shape index: {}]
  %s4 = inlined_call_operand.vmem [shape: bf16[49,49], index: 4, kind: input, shape index: {}]
  %s5 = inlined_call_operand.vmem [shape: f32[4,49], index: 5, kind: input, shape index: {}]
  %s6 = inlined_call_operand.vmem [shape: bf16[49,32], index: 6, kind: input, shape index: {}]
  %s7 = inlined_call_operand.hbm [shape: f32[1,32], index: 7, kind: input, shape index: {}]
  %s8 = inlined_call_operand.vmem [shape: bf16[32,2], index: 8, kind: input, shape index: {}]
  %s9 = inlined_call_operand.hbm [shape: f32[1,2], index: 9, kind: input, shape index: {}]
  %s10 = inlined_call_operand.vmem [shape: f32[8,128], index: 10, kind: output, shape index: {}]
  %s11 = sld [smem:[#allocation0]]
  $region58: #{nolatbuild_forward.1} parent=0
    _
  %s13 = ssub.s32 1, %s11
  %s14 = scalar_select 0, %s13, %s11
  $region1: #{nolatbuild_forward.1} parent=0
    #allocation2 [shape = 'u8[512]{0}', space=vmem, size = 0x400, scoped, tag = 'input window, operand 7, single buffered']
    #allocation3 [shape = 's32[1]{0}', space=sflag, size = 0x4, scoped, tag = 'scoped memory for nolatbuild_forward.1']
    #allocation4 [shape = 'u8[512]{0}', space=vmem, size = 0x400, scoped, tag = 'input window, operand 9, single buffered']
    #allocation5 [shape = 's32[1]{0}', space=sflag, size = 0x4, scoped, tag = 'scoped memory for nolatbuild_forward.1']
    %15 = vsyncpa [#allocation3], 0
    %16 = vsyncpa [#allocation5], 0
    // Predicated region
    $region2: #{nolatbuild_forward.1} parent=1 // pred_check
      _
    $region3: #{nolatbuild_forward.1} parent=1 // pred_check_branch
      %18 = sbr.rel (0) target = $region5
    $region4: #{nolatbuild_forward.1} parent=1 // pred_region
      _
    $region5: #{nolatbuild_forward.1} parent=1 // pred_fallthru
      _
    // Predicated region
    $region6: #{nolatbuild_forward.1} parent=1 // pred_check
      _
    $region7: #{nolatbuild_forward.1} parent=1 // pred_check_branch
      %20 = sbr.rel (0) target = $region9
    $region8: #{nolatbuild_forward.1} parent=1 // pred_region
      _
    $region9: #{nolatbuild_forward.1} parent=1 // pred_fallthru
      _
    // Predicated region
    $region10: #{nolatbuild_forward.1} parent=1 // pred_check
      _
    $region11: #{nolatbuild_forward.1} parent=1 // pred_check_branch
      %22 = sbr.rel (0) target = $region13
    $region12: #{nolatbuild_forward.1} parent=1 // pred_region
      _
    $region13: #{nolatbuild_forward.1} parent=1 // pred_fallthru
      _
    // Predicated region
    $region14: #{nolatbuild_forward.1} parent=1 // pred_check
      _
    $region15: #{nolatbuild_forward.1} parent=1 // pred_check_branch
      %24 = sbr.rel (0) target = $region17
    $region16: #{nolatbuild_forward.1} parent=1 // pred_region
      _
    $region17: #{nolatbuild_forward.1} parent=1 // pred_fallthru
      _
    // Predicated region
    $region18: #{nolatbuild_forward.1} parent=1 // pred_check
      _
    $region19: #{nolatbuild_forward.1} parent=1 // pred_check_branch
      %26 = sbr.rel (0) target = $region21
    $region20: #{nolatbuild_forward.1} parent=1 // pred_region
      _
    $region21: #{nolatbuild_forward.1} parent=1 // pred_fallthru
      _
    // Predicated region
    $region22: #{nolatbuild_forward.1} parent=1 // pred_check
      _
    $region23: #{nolatbuild_forward.1} parent=1 // pred_check_branch
      %28 = sbr.rel (0) target = $region25
    $region24: #{nolatbuild_forward.1} parent=1 // pred_region
      _
    $region25: #{nolatbuild_forward.1} parent=1 // pred_fallthru
      _
    // Predicated region
    $region26: #{nolatbuild_forward.1} parent=1 // pred_check
      _
    $region27: #{nolatbuild_forward.1} parent=1 // pred_check_branch
      %30 = sbr.rel (0) target = $region29
    $region28: #{nolatbuild_forward.1} parent=1 // pred_region
      _
    $region29: #{nolatbuild_forward.1} parent=1 // pred_fallthru
      _
    // Predicated region
    $region30: #{nolatbuild_forward.1} parent=1 // pred_check
      _
    $region31: #{nolatbuild_forward.1} parent=1 // pred_check_branch
      %32 = sbr.rel (0) target = $region33
    $region32: #{nolatbuild_forward.1} parent=1 // pred_region
      %s34 = ssub.s32 16, 16
      %35 = vsyncadd [#allocation3], %s34
      %s37 = sshll.u32 [#allocation2], 4
      %s38 = int_to_ptr.vmem [resolvable:$true] %s37
      %40 = dma.hbm_to_vmem [thread:$0]  %s7, 16, %s38, [#allocation3]
    $region33: #{nolatbuild_forward.1} parent=1 // pred_fallthru
      _
    // Predicated region
    $region34: #{nolatbuild_forward.1} parent=1 // pred_check
      _
    $region35: #{nolatbuild_forward.1} parent=1 // pred_check_branch
      %42 = sbr.rel (0) target = $region37
    $region36: #{nolatbuild_forward.1} parent=1 // pred_region
      _
    $region37: #{nolatbuild_forward.1} parent=1 // pred_fallthru
      _
    // Predicated region
    $region38: #{nolatbuild_forward.1} parent=1 // pred_check
      _
    $region39: #{nolatbuild_forward.1} parent=1 // pred_check_branch
      %44 = sbr.rel (0) target = $region41
    $region40: #{nolatbuild_forward.1} parent=1 // pred_region
      %s46 = ssub.s32 16, 16
      %47 = vsyncadd [#allocation5], %s46
      %s49 = sshll.u32 [#allocation4], 4
      %s50 = int_to_ptr.vmem [resolvable:$true] %s49
      %52 = dma.hbm_to_vmem [thread:$0]  %s9, 16, %s50, [#allocation5]
    $region41: #{nolatbuild_forward.1} parent=1 // pred_fallthru
      _
    // Predicated region
    $region42: #{nolatbuild_forward.1} parent=1 // pred_check
      _
    $region43: #{nolatbuild_forward.1} parent=1 // pred_check_branch
      %54 = sbr.rel (0) target = $region45
    $region44: #{nolatbuild_forward.1} parent=1 // pred_region
      %55 = dma.done [#allocation3], 16
    $region45: #{nolatbuild_forward.1} parent=1 // pred_fallthru
      _
    // Predicated region
    $region46: #{nolatbuild_forward.1} parent=1 // pred_check
      _
    $region47: #{nolatbuild_forward.1} parent=1 // pred_check_branch
      %57 = sbr.rel (0) target = $region49
    $region48: #{nolatbuild_forward.1} parent=1 // pred_region
      %58 = dma.done [#allocation5], 16
    $region49: #{nolatbuild_forward.1} parent=1 // pred_fallthru
      _
    %v60 = vld [vmem:[%s0] sm:$0xff]
    %v61 = vld [vmem:[%s5] sm:$0x1]
    %v62 = vld [vmem:[%s5 + $0x1] sm:$0x1]
    %v63 = vld [vmem:[%s5 + $0x2] sm:$0x1]
    %v64 = vld [vmem:[%s5 + $0x3] sm:$0x1]
    %v65 = vpack.c.bf16 %v60, %v60
    %v66 = vld [vmem:[%s1] sm:$0xf]
    %v67 = vld [vmem:[%s1 + $0x4] sm:$0xf]
    %v68 = vld [vmem:[%s1 + $0x8] sm:$0xf]
    %v69 = vld [vmem:[%s1 + $0xc] sm:$0xf]
    %v70 = vld [vmem:[%s1 + $0x10] sm:$0xf]
    %v71 = vld [vmem:[%s1 + $0x14] sm:$0xf]
    %v72 = vld [vmem:[%s1 + $0x18] sm:$0x1]
    %v73 = vlaneseq
    %v74 = vshrl.u32 %v73, 7
    %v75 = vsub.s32 0, %v74
    %v76 = vrot.slane %v61, %v75
    %v84 = vunpack.c.l.b16 %v66
    %v85 = vunpack.c.l.b16 %v67
    %v86 = vunpack.c.l.b16 %v68
    %v87 = vunpack.c.l.b16 %v69
    %v88 = vunpack.c.l.b16 %v70
    %v89 = vunpack.c.l.b16 %v71
    %v90 = vunpack.c.l.b16 %v72
    %v91 = vpack.c.b16 %v85, %v84
    %v92 = vpack.c.b16 %v87, %v86
    %v93 = vpack.c.b16 %v89, %v88
    %v94 = vpack.c.b16 %v90, %v90
    %vm98 = vcmask 400384
    %v100 = vsel %vm98, %v65, 0
    %vm102 = vcmask 1040384
    %v103 = vsel 0, 4294967295, 65535
    %v104 = vsel %vm102, %v103, 0
    %v106 = vand.u32 %v94, %v104
    %108 = vmatprep.subr.bf16.mxu0 0
    %109 = vmatpush1.bf16.msra.mxu0 0
    %110 = vmatprep.subr.bf16.mxu0 0
    %111 = vmatpush1.bf16.msra.mxu0 0
    %112 = vmatprep.subr.bf16.mxu0 0
    %113 = vmatpush1.bf16.msra.mxu0 0
    %114 = vmatprep.subr.bf16.mxu0 0
    %115 = vmatpush1.bf16.msra.mxu0 0
    %116 = vmatprep.subr.bf16.mxu0 0
    %117 = vmatpush1.bf16.msra.mxu0 %v106
    %118 = vmatprep.subr.bf16.mxu0 0
    %119 = vmatpush1.bf16.msra.mxu0 %v93
    %120 = vmatprep.subr.bf16.mxu0 0
    %121 = vmatpush1.bf16.msra.mxu0 %v92
    %122 = vmatprep.subr.bf16.mxu0 0
    %123 = vmatpush1.bf16.msra.mxu0 %v91
    %124 = vmatprep.subr.bf16.mxu0 0
    %125 = vmatpush2.bf16.msra.mxu0 0
    %126 = vmatprep.subr.bf16.mxu0 0
    %127 = vmatpush2.bf16.msra.mxu0 0
    %128 = vmatprep.subr.bf16.mxu0 0
    %129 = vmatpush2.bf16.msra.mxu0 0
    %130 = vmatprep.subr.bf16.mxu0 0
    %131 = vmatpush2.bf16.msra.mxu0 0
    %132 = vmatprep.subr.bf16.mxu0 0
    %133 = vmatpush2.bf16.msra.mxu0 0
    %134 = vmatprep.subr.bf16.mxu0 0
    %135 = vmatpush2.bf16.msra.mxu0 0
    %136 = vmatprep.subr.bf16.mxu0 0
    %137 = vmatpush2.bf16.msra.mxu0 0
    %138 = vmatprep.subr.bf16.mxu0 0
    %139 = vmatpush2.bf16.msra.mxu0 0
    %140 = vmatprep.mubr.bf16.mxu0 0
    %141 = vmatmul.mubr.bf16.gmra.mxu0 %v100
    %v142 = vpop.f32.mrf.mxu0
    %v143 = vadd.f32 %v76, %v142
    %v144 = vpop.f32.mrf.mxu0
    %v145 = vpop.f32.mrf.mxu0
    %v146 = vpop.f32.mrf.mxu0
    %147 = vdwg.mxu0
    %v148 = vmax.f32 %v143, 0.0
    %v149 = vpack.c.bf16 %v148, %v148
    %v150 = vld [vmem:[%s2] sm:$0xf]
    %v151 = vld [vmem:[%s2 + $0x4] sm:$0xf]
    %v152 = vld [vmem:[%s2 + $0x8] sm:$0xf]
    %v153 = vld [vmem:[%s2 + $0xc] sm:$0xf]
    %v154 = vld [vmem:[%s2 + $0x10] sm:$0xf]
    %v155 = vld [vmem:[%s2 + $0x14] sm:$0xf]
    %v156 = vld [vmem:[%s2 + $0x18] sm:$0x1]
    %v157 = vlaneseq
    %v158 = vshrl.u32 %v157, 7
    %v159 = vsub.s32 0, %v158
    %v160 = vrot.slane %v62, %v159
    %v168 = vunpack.c.l.b16 %v150
    %v169 = vunpack.c.l.b16 %v151
    %v170 = vunpack.c.l.b16 %v152
    %v171 = vunpack.c.l.b16 %v153
    %v172 = vunpack.c.l.b16 %v154
    %v173 = vunpack.c.l.b16 %v155
    %v174 = vunpack.c.l.b16 %v156
    %v175 = vpack.c.b16 %v169, %v168
    %v176 = vpack.c.b16 %v171, %v170
    %v177 = vpack.c.b16 %v173, %v172
    %v178 = vpack.c.b16 %v174, %v174
    %v183 = vsel %vm98, %v149, 0
    %v186 = vand.u32 %v178, %v104
    %188 = vmatprep.subr.bf16.mxu0 0
    %189 = vmatpush1.bf16.msra.mxu0 0
    %190 = vmatprep.subr.bf16.mxu0 0
    %191 = vmatpush1.bf16.msra.mxu0 0
    %192 = vmatprep.subr.bf16.mxu0 0
    %193 = vmatpush1.bf16.msra.mxu0 0
    %194 = vmatprep.subr.bf16.mxu0 0
    %195 = vmatpush1.bf16.msra.mxu0 0
    %196 = vmatprep.subr.bf16.mxu0 0
    %197 = vmatpush1.bf16.msra.mxu0 %v186
    %198 = vmatprep.subr.bf16.mxu0 0
    %199 = vmatpush1.bf16.msra.mxu0 %v177
    %200 = vmatprep.subr.bf16.mxu0 0
    %201 = vmatpush1.bf16.msra.mxu0 %v176
    %202 = vmatprep.subr.bf16.mxu0 0
    %203 = vmatpush1.bf16.msra.mxu0 %v175
    %204 = vmatprep.subr.bf16.mxu0 0
    %205 = vmatpush2.bf16.msra.mxu0 0
    %206 = vmatprep.subr.bf16.mxu0 0
    %207 = vmatpush2.bf16.msra.mxu0 0
    %208 = vmatprep.subr.bf16.mxu0 0
    %209 = vmatpush2.bf16.msra.mxu0 0
    %210 = vmatprep.subr.bf16.mxu0 0
    %211 = vmatpush2.bf16.msra.mxu0 0
    %212 = vmatprep.subr.bf16.mxu0 0
    %213 = vmatpush2.bf16.msra.mxu0 0
    %214 = vmatprep.subr.bf16.mxu0 0
    %215 = vmatpush2.bf16.msra.mxu0 0
    %216 = vmatprep.subr.bf16.mxu0 0
    %217 = vmatpush2.bf16.msra.mxu0 0
    %218 = vmatprep.subr.bf16.mxu0 0
    %219 = vmatpush2.bf16.msra.mxu0 0
    %220 = vmatprep.mubr.bf16.mxu0 0
    %221 = vmatmul.mubr.bf16.gmra.mxu0 %v183
    %v222 = vpop.f32.mrf.mxu0
    %v223 = vadd.f32 %v160, %v222
    %v224 = vpop.f32.mrf.mxu0
    %v225 = vpop.f32.mrf.mxu0
    %v226 = vpop.f32.mrf.mxu0
    %227 = vdwg.mxu0
    %v228 = vmax.f32 %v223, 0.0
    %v229 = vadd.f32 %v228, %v60
    %v230 = vpack.c.bf16 %v229, %v229
    %v232 = vsel %vm98, %v230, 0
    %234 = vmatprep.subr.bf16.mxu0 0
    %235 = vmatpush1.bf16.msra.mxu0 0
    %236 = vmatprep.subr.bf16.mxu0 0
    %237 = vmatpush1.bf16.msra.mxu0 0
    %238 = vmatprep.subr.bf16.mxu0 0
    %239 = vmatpush1.bf16.msra.mxu0 0
    %240 = vmatprep.subr.bf16.mxu0 0
    %241 = vmatpush1.bf16.msra.mxu0 0
    %242 = vmatprep.subr.bf16.mxu0 0
    %243 = vmatpush1.bf16.msra.mxu0 %v106
    %244 = vmatprep.subr.bf16.mxu0 0
    %245 = vmatpush1.bf16.msra.mxu0 %v93
    %246 = vmatprep.subr.bf16.mxu0 0
    %247 = vmatpush1.bf16.msra.mxu0 %v92
    %248 = vmatprep.subr.bf16.mxu0 0
    %249 = vmatpush1.bf16.msra.mxu0 %v91
    %250 = vmatprep.subr.bf16.mxu0 0
    %251 = vmatpush2.bf16.msra.mxu0 0
    %252 = vmatprep.subr.bf16.mxu0 0
    %253 = vmatpush2.bf16.msra.mxu0 0
    %254 = vmatprep.subr.bf16.mxu0 0
    %255 = vmatpush2.bf16.msra.mxu0 0
    %256 = vmatprep.subr.bf16.mxu0 0
    %257 = vmatpush2.bf16.msra.mxu0 0
    %258 = vmatprep.subr.bf16.mxu0 0
    %259 = vmatpush2.bf16.msra.mxu0 0
    %260 = vmatprep.subr.bf16.mxu0 0
    %261 = vmatpush2.bf16.msra.mxu0 0
    %262 = vmatprep.subr.bf16.mxu0 0
    %263 = vmatpush2.bf16.msra.mxu0 0
    %264 = vmatprep.subr.bf16.mxu0 0
    %265 = vmatpush2.bf16.msra.mxu0 0
    %266 = vmatprep.mubr.bf16.mxu0 0
    %267 = vmatmul.mubr.bf16.gmra.mxu0 %v232
    %v268 = vpop.f32.mrf.mxu0
    %v269 = vadd.f32 %v76, %v268
    %v270 = vpop.f32.mrf.mxu0
    %v271 = vpop.f32.mrf.mxu0
    %v272 = vpop.f32.mrf.mxu0
    %273 = vdwg.mxu0
    %v274 = vmax.f32 %v269, 0.0
    %v275 = vpack.c.bf16 %v274, %v274
    %v277 = vsel %vm98, %v275, 0
    %279 = vmatprep.subr.bf16.mxu0 0
    %280 = vmatpush1.bf16.msra.mxu0 0
    %281 = vmatprep.subr.bf16.mxu0 0
    %282 = vmatpush1.bf16.msra.mxu0 0
    %283 = vmatprep.subr.bf16.mxu0 0
    %284 = vmatpush1.bf16.msra.mxu0 0
    %285 = vmatprep.subr.bf16.mxu0 0
    %286 = vmatpush1.bf16.msra.mxu0 0
    %287 = vmatprep.subr.bf16.mxu0 0
    %288 = vmatpush1.bf16.msra.mxu0 %v186
    %289 = vmatprep.subr.bf16.mxu0 0
    %290 = vmatpush1.bf16.msra.mxu0 %v177
    %291 = vmatprep.subr.bf16.mxu0 0
    %292 = vmatpush1.bf16.msra.mxu0 %v176
    %293 = vmatprep.subr.bf16.mxu0 0
    %294 = vmatpush1.bf16.msra.mxu0 %v175
    %295 = vmatprep.subr.bf16.mxu0 0
    %296 = vmatpush2.bf16.msra.mxu0 0
    %297 = vmatprep.subr.bf16.mxu0 0
    %298 = vmatpush2.bf16.msra.mxu0 0
    %299 = vmatprep.subr.bf16.mxu0 0
    %300 = vmatpush2.bf16.msra.mxu0 0
    %301 = vmatprep.subr.bf16.mxu0 0
    %302 = vmatpush2.bf16.msra.mxu0 0
    %303 = vmatprep.subr.bf16.mxu0 0
    %304 = vmatpush2.bf16.msra.mxu0 0
    %305 = vmatprep.subr.bf16.mxu0 0
    %306 = vmatpush2.bf16.msra.mxu0 0
    %307 = vmatprep.subr.bf16.mxu0 0
    %308 = vmatpush2.bf16.msra.mxu0 0
    %309 = vmatprep.subr.bf16.mxu0 0
    %310 = vmatpush2.bf16.msra.mxu0 0
    %311 = vmatprep.mubr.bf16.mxu0 0
    %312 = vmatmul.mubr.bf16.gmra.mxu0 %v277
    %v313 = vpop.f32.mrf.mxu0
    %v314 = vadd.f32 %v160, %v313
    %v315 = vpop.f32.mrf.mxu0
    %v316 = vpop.f32.mrf.mxu0
    %v317 = vpop.f32.mrf.mxu0
    %318 = vdwg.mxu0
    %v319 = vmax.f32 %v314, 0.0
    %v320 = vadd.f32 %v319, %v60
    %v321 = vpack.c.bf16 %v320, %v320
    %v322 = vld [vmem:[%s3] sm:$0xf]
    %v323 = vld [vmem:[%s3 + $0x4] sm:$0xf]
    %v324 = vld [vmem:[%s3 + $0x8] sm:$0xf]
    %v325 = vld [vmem:[%s3 + $0xc] sm:$0xf]
    %v326 = vld [vmem:[%s3 + $0x10] sm:$0xf]
    %v327 = vld [vmem:[%s3 + $0x14] sm:$0xf]
    %v328 = vld [vmem:[%s3 + $0x18] sm:$0x1]
    %v329 = vlaneseq
    %v330 = vshrl.u32 %v329, 7
    %v331 = vsub.s32 0, %v330
    %v332 = vrot.slane %v63, %v331
    %v340 = vunpack.c.l.b16 %v322
    %v341 = vunpack.c.l.b16 %v323
    %v342 = vunpack.c.l.b16 %v324
    %v343 = vunpack.c.l.b16 %v325
    %v344 = vunpack.c.l.b16 %v326
    %v345 = vunpack.c.l.b16 %v327
    %v346 = vunpack.c.l.b16 %v328
    %v347 = vpack.c.b16 %v341, %v340
    %v348 = vpack.c.b16 %v343, %v342
    %v349 = vpack.c.b16 %v345, %v344
    %v350 = vpack.c.b16 %v346, %v346
    %v355 = vsel %vm98, %v321, 0
    %v358 = vand.u32 %v350, %v104
    %360 = vmatprep.subr.bf16.mxu0 0
    %361 = vmatpush1.bf16.msra.mxu0 0
    %362 = vmatprep.subr.bf16.mxu0 0
    %363 = vmatpush1.bf16.msra.mxu0 0
    %364 = vmatprep.subr.bf16.mxu0 0
    %365 = vmatpush1.bf16.msra.mxu0 0
    %366 = vmatprep.subr.bf16.mxu0 0
    %367 = vmatpush1.bf16.msra.mxu0 0
    %368 = vmatprep.subr.bf16.mxu0 0
    %369 = vmatpush1.bf16.msra.mxu0 %v358
    %370 = vmatprep.subr.bf16.mxu0 0
    %371 = vmatpush1.bf16.msra.mxu0 %v349
    %372 = vmatprep.subr.bf16.mxu0 0
    %373 = vmatpush1.bf16.msra.mxu0 %v348
    %374 = vmatprep.subr.bf16.mxu0 0
    %375 = vmatpush1.bf16.msra.mxu0 %v347
    %376 = vmatprep.subr.bf16.mxu0 0
    %377 = vmatpush2.bf16.msra.mxu0 0
    %378 = vmatprep.subr.bf16.mxu0 0
    %379 = vmatpush2.bf16.msra.mxu0 0
    %380 = vmatprep.subr.bf16.mxu0 0
    %381 = vmatpush2.bf16.msra.mxu0 0
    %382 = vmatprep.subr.bf16.mxu0 0
    %383 = vmatpush2.bf16.msra.mxu0 0
    %384 = vmatprep.subr.bf16.mxu0 0
    %385 = vmatpush2.bf16.msra.mxu0 0
    %386 = vmatprep.subr.bf16.mxu0 0
    %387 = vmatpush2.bf16.msra.mxu0 0
    %388 = vmatprep.subr.bf16.mxu0 0
    %389 = vmatpush2.bf16.msra.mxu0 0
    %390 = vmatprep.subr.bf16.mxu0 0
    %391 = vmatpush2.bf16.msra.mxu0 0
    %392 = vmatprep.mubr.bf16.mxu0 0
    %393 = vmatmul.mubr.bf16.gmra.mxu0 %v355
    %v394 = vpop.f32.mrf.mxu0
    %v395 = vadd.f32 %v332, %v394
    %v396 = vpop.f32.mrf.mxu0
    %v397 = vpop.f32.mrf.mxu0
    %v398 = vpop.f32.mrf.mxu0
    %399 = vdwg.mxu0
    %v400 = vmax.f32 %v395, 0.0
    %v401 = vpack.c.bf16 %v400, %v400
    %v402 = vld [vmem:[%s4] sm:$0xf]
    %v403 = vld [vmem:[%s4 + $0x4] sm:$0xf]
    %v404 = vld [vmem:[%s4 + $0x8] sm:$0xf]
    %v405 = vld [vmem:[%s4 + $0xc] sm:$0xf]
    %v406 = vld [vmem:[%s4 + $0x10] sm:$0xf]
    %v407 = vld [vmem:[%s4 + $0x14] sm:$0xf]
    %v408 = vld [vmem:[%s4 + $0x18] sm:$0x1]
    %v409 = vlaneseq
    %v410 = vshrl.u32 %v409, 7
    %v411 = vsub.s32 0, %v410
    %v412 = vrot.slane %v64, %v411
    %v420 = vunpack.c.l.b16 %v402
    %v421 = vunpack.c.l.b16 %v403
    %v422 = vunpack.c.l.b16 %v404
    %v423 = vunpack.c.l.b16 %v405
    %v424 = vunpack.c.l.b16 %v406
    %v425 = vunpack.c.l.b16 %v407
    %v426 = vunpack.c.l.b16 %v408
    %v427 = vpack.c.b16 %v421, %v420
    %v428 = vpack.c.b16 %v423, %v422
    %v429 = vpack.c.b16 %v425, %v424
    %v430 = vpack.c.b16 %v426, %v426
    %v435 = vsel %vm98, %v401, 0
    %v438 = vand.u32 %v430, %v104
    %440 = vmatprep.subr.bf16.mxu0 0
    %441 = vmatpush1.bf16.msra.mxu0 0
    %442 = vmatprep.subr.bf16.mxu0 0
    %443 = vmatpush1.bf16.msra.mxu0 0
    %444 = vmatprep.subr.bf16.mxu0 0
    %445 = vmatpush1.bf16.msra.mxu0 0
    %446 = vmatprep.subr.bf16.mxu0 0
    %447 = vmatpush1.bf16.msra.mxu0 0
    %448 = vmatprep.subr.bf16.mxu0 0
    %449 = vmatpush1.bf16.msra.mxu0 %v438
    %450 = vmatprep.subr.bf16.mxu0 0
    %451 = vmatpush1.bf16.msra.mxu0 %v429
    %452 = vmatprep.subr.bf16.mxu0 0
    %453 = vmatpush1.bf16.msra.mxu0 %v428
    %454 = vmatprep.subr.bf16.mxu0 0
    %455 = vmatpush1.bf16.msra.mxu0 %v427
    %456 = vmatprep.subr.bf16.mxu0 0
    %457 = vmatpush2.bf16.msra.mxu0 0
    %458 = vmatprep.subr.bf16.mxu0 0
    %459 = vmatpush2.bf16.msra.mxu0 0
    %460 = vmatprep.subr.bf16.mxu0 0
    %461 = vmatpush2.bf16.msra.mxu0 0
    %462 = vmatprep.subr.bf16.mxu0 0
    %463 = vmatpush2.bf16.msra.mxu0 0
    %464 = vmatprep.subr.bf16.mxu0 0
    %465 = vmatpush2.bf16.msra.mxu0 0
    %466 = vmatprep.subr.bf16.mxu0 0
    %467 = vmatpush2.bf16.msra.mxu0 0
    %468 = vmatprep.subr.bf16.mxu0 0
    %469 = vmatpush2.bf16.msra.mxu0 0
    %470 = vmatprep.subr.bf16.mxu0 0
    %471 = vmatpush2.bf16.msra.mxu0 0
    %472 = vmatprep.mubr.bf16.mxu0 0
    %473 = vmatmul.mubr.bf16.gmra.mxu0 %v435
    %v474 = vpop.f32.mrf.mxu0
    %v475 = vadd.f32 %v412, %v474
    %v476 = vpop.f32.mrf.mxu0
    %v477 = vpop.f32.mrf.mxu0
    %v478 = vpop.f32.mrf.mxu0
    %479 = vdwg.mxu0
    %v480 = vmax.f32 %v475, 0.0
    %v481 = vadd.f32 %v480, %v60
    %v482 = vmax.f32 %v481, 0.0
    %v483 = vpack.c.bf16 %v482, %v482
    %v484 = vld [vmem:[%s6] sm:$0xf]
    %v485 = vld [vmem:[%s6 + $0x4] sm:$0xf]
    %v486 = vld [vmem:[%s6 + $0x8] sm:$0xf]
    %v487 = vld [vmem:[%s6 + $0xc] sm:$0xf]
    %v488 = vld [vmem:[%s6 + $0x10] sm:$0xf]
    %v489 = vld [vmem:[%s6 + $0x14] sm:$0xf]
    %v490 = vld [vmem:[%s6 + $0x18] sm:$0x1]
    %v491 = vld [vmem:[#allocation2] sm:$0x1]
    %v493 = vlaneseq
    %v494 = vshrl.u32 %v493, 7
    %v495 = vsub.s32 0, %v494
    %v496 = vrot.slane %v491, %v495
    %v505 = vunpack.c.l.b16 %v484
    %v506 = vunpack.c.l.b16 %v485
    %v507 = vunpack.c.l.b16 %v486
    %v508 = vunpack.c.l.b16 %v487
    %v509 = vunpack.c.l.b16 %v488
    %v510 = vunpack.c.l.b16 %v489
    %v511 = vunpack.c.l.b16 %v490
    %v512 = vpack.c.b16 %v506, %v505
    %v513 = vpack.c.b16 %v508, %v507
    %v514 = vpack.c.b16 %v510, %v509
    %v515 = vpack.c.b16 %v511, %v511
    %v520 = vsel %vm98, %v483, 0
    %v523 = vand.u32 %v515, %v104
    %525 = vmatprep.subr.bf16.mxu0 0
    %526 = vmatpush1.bf16.msra.mxu0 0
    %527 = vmatprep.subr.bf16.mxu0 0
    %528 = vmatpush1.bf16.msra.mxu0 0
    %529 = vmatprep.subr.bf16.mxu0 0
    %530 = vmatpush1.bf16.msra.mxu0 0
    %531 = vmatprep.subr.bf16.mxu0 0
    %532 = vmatpush1.bf16.msra.mxu0 0
    %533 = vmatprep.subr.bf16.mxu0 0
    %534 = vmatpush1.bf16.msra.mxu0 %v523
    %535 = vmatprep.subr.bf16.mxu0 0
    %536 = vmatpush1.bf16.msra.mxu0 %v514
    %537 = vmatprep.subr.bf16.mxu0 0
    %538 = vmatpush1.bf16.msra.mxu0 %v513
    %539 = vmatprep.subr.bf16.mxu0 0
    %540 = vmatpush1.bf16.msra.mxu0 %v512
    %541 = vmatprep.subr.bf16.mxu0 0
    %542 = vmatpush2.bf16.msra.mxu0 0
    %543 = vmatprep.subr.bf16.mxu0 0
    %544 = vmatpush2.bf16.msra.mxu0 0
    %545 = vmatprep.subr.bf16.mxu0 0
    %546 = vmatpush2.bf16.msra.mxu0 0
    %547 = vmatprep.subr.bf16.mxu0 0
    %548 = vmatpush2.bf16.msra.mxu0 0
    %549 = vmatprep.subr.bf16.mxu0 0
    %550 = vmatpush2.bf16.msra.mxu0 0
    %551 = vmatprep.subr.bf16.mxu0 0
    %552 = vmatpush2.bf16.msra.mxu0 0
    %553 = vmatprep.subr.bf16.mxu0 0
    %554 = vmatpush2.bf16.msra.mxu0 0
    %555 = vmatprep.subr.bf16.mxu0 0
    %556 = vmatpush2.bf16.msra.mxu0 0
    %557 = vmatprep.mubr.bf16.mxu0 0
    %558 = vmatmul.mubr.bf16.gmra.mxu0 %v520
    %v559 = vpop.f32.mrf.mxu0
    %v560 = vadd.f32 %v496, %v559
    %v561 = vpop.f32.mrf.mxu0
    %v562 = vpop.f32.mrf.mxu0
    %v563 = vpop.f32.mrf.mxu0
    %564 = vdwg.mxu0
    %v565 = vmax.f32 %v560, 0.0
    %v566 = vpack.c.bf16 %v565, %v565
    %v567 = vld [vmem:[%s8] sm:$0xf]
    %v568 = vld [vmem:[%s8 + $0x4] sm:$0xf]
    %v569 = vld [vmem:[%s8 + $0x8] sm:$0xf]
    %v570 = vld [vmem:[%s8 + $0xc] sm:$0xf]
    %v571 = vld [vmem:[#allocation4] sm:$0x1]
    %v573 = vlaneseq
    %v574 = vshrl.u32 %v573, 7
    %v575 = vsub.s32 0, %v574
    %v576 = vrot.slane %v571, %v575
    %v582 = vunpack.c.l.b16 %v567
    %v583 = vunpack.c.l.b16 %v568
    %v584 = vunpack.c.l.b16 %v569
    %v585 = vunpack.c.l.b16 %v570
    %v586 = vpack.c.b16 %v583, %v582
    %v587 = vpack.c.b16 %v585, %v584
    %vm590 = vcmask 261120
    %v592 = vsel %vm590, %v566, 0
    %594 = vmatprep.subr.bf16.mxu0 0
    %595 = vmatpush1.bf16.msra.mxu0 0
    %596 = vmatprep.subr.bf16.mxu0 0
    %597 = vmatpush1.bf16.msra.mxu0 0
    %598 = vmatprep.subr.bf16.mxu0 0
    %599 = vmatpush1.bf16.msra.mxu0 0
    %600 = vmatprep.subr.bf16.mxu0 0
    %601 = vmatpush1.bf16.msra.mxu0 0
    %602 = vmatprep.subr.bf16.mxu0 0
    %603 = vmatpush1.bf16.msra.mxu0 0
    %604 = vmatprep.subr.bf16.mxu0 0
    %605 = vmatpush1.bf16.msra.mxu0 0
    %606 = vmatprep.subr.bf16.mxu0 0
    %607 = vmatpush1.bf16.msra.mxu0 %v587
    %608 = vmatprep.subr.bf16.mxu0 0
    %609 = vmatpush1.bf16.msra.mxu0 %v586
    %610 = vmatprep.subr.bf16.mxu0 0
    %611 = vmatpush2.bf16.msra.mxu0 0
    %612 = vmatprep.subr.bf16.mxu0 0
    %613 = vmatpush2.bf16.msra.mxu0 0
    %614 = vmatprep.subr.bf16.mxu0 0
    %615 = vmatpush2.bf16.msra.mxu0 0
    %616 = vmatprep.subr.bf16.mxu0 0
    %617 = vmatpush2.bf16.msra.mxu0 0
    %618 = vmatprep.subr.bf16.mxu0 0
    %619 = vmatpush2.bf16.msra.mxu0 0
    %620 = vmatprep.subr.bf16.mxu0 0
    %621 = vmatpush2.bf16.msra.mxu0 0
    %622 = vmatprep.subr.bf16.mxu0 0
    %623 = vmatpush2.bf16.msra.mxu0 0
    %624 = vmatprep.subr.bf16.mxu0 0
    %625 = vmatpush2.bf16.msra.mxu0 0
    %626 = vmatprep.mubr.bf16.mxu0 0
    %627 = vmatmul.mubr.bf16.gmra.mxu0 %v592
    %v628 = vpop.f32.mrf.mxu0
    %v629 = vadd.f32 %v576, %v628
    %v630 = vpop.f32.mrf.mxu0
    %v631 = vpop.f32.mrf.mxu0
    %v632 = vpop.f32.mrf.mxu0
    %633 = vdwg.mxu0
    %635 = vrot.lane.b32.xlu0 %v629, 32
    %v636 = vpop.permute.xlu0 %635
    %v638 = vsel %vm590, %v565, %v636
    %vm639 = vcmask 277504
    %v640 = vsel %vm639, %v638, 0.0
    %641 = vst [vmem:[%s10] sm:$0xff] %v640
    // Predicated region
    $region50: #{nolatbuild_forward.1} parent=1 // pred_check
      _
    $region51: #{nolatbuild_forward.1} parent=1 // pred_check_branch
      %643 = sbr.rel (0) target = $region53
    $region52: #{nolatbuild_forward.1} parent=1 // pred_region
      _
    $region53: #{nolatbuild_forward.1} parent=1 // pred_fallthru
      _
    // Predicated region
    $region54: #{nolatbuild_forward.1} parent=1 // pred_check
      _
    $region55: #{nolatbuild_forward.1} parent=1 // pred_check_branch
      %645 = sbr.rel (0) target = $region57
    $region56: #{nolatbuild_forward.1} parent=1 // pred_region
      _
    $region57: #{nolatbuild_forward.1} parent=1 // pred_fallthru
      _
    %646 = vsyncpa [#allocation3], 1
    %647 = vsyncpa [#allocation5], 1

</llo_original>
